<compile_context>
chip_gen: v6e
topology: v6e:2x2x1
jax: 0.10.0
libtpu: 0.0.40
codegen_flags: <defaults>
</compile_context>

<pallas_src>
import functools

import jax
import jax.numpy as jnp
from jax.experimental import pallas as pl
from jax.experimental.pallas import tpu as pltpu

_SQRT_2_OVER_PI = 0.7978845608028654


def mlp_kernel(x_ref, w1t_ref, b1_ref, w2t_ref, b2_ref, o_ref):
    # x_ref: (TB, F)   w1t_ref: (F, H)   b1_ref: (1, H)
    # w2t_ref: (H, Cp) b2_ref: (1, Cp)   o_ref: (TB, Cp)
    x = x_ref[...]
    # Linear 1 on the MXU, f32 accumulation.
    z1 = jnp.dot(x, w1t_ref[...], preferred_element_type=jnp.float32) + b1_ref[...]
    # GELU (tanh approximation): mul/add on VPU, tanh on EUP.
    h = 0.5 * z1 * (1.0 + jnp.tanh(_SQRT_2_OVER_PI * (z1 + 0.044715 * z1 * z1 * z1)))
    # TODO(synk): nn.Dropout is identity at inference; training-mode stochastic
    # dropout (pltpu.prng_seed / prng_random_bits mask) is not implemented.
    # Linear 2 on the MXU.
    z2 = jnp.dot(h, w2t_ref[...], preferred_element_type=jnp.float32) + b2_ref[...]
    o_ref[...] = z2.astype(o_ref.dtype)


@functools.partial(jax.jit, static_argnames=("block_b",))
def mlp_forward(x, w1, b1, w2, b2, *, block_b=256):
    """x: [B, F], w1: [H, F], b1: [H], w2: [C, H], b2: [C] -> [B, C] f32."""
    B, F = x.shape
    H = w1.shape[0]
    C = w2.shape[0]

    # Lane-dense output: pad classes up to a multiple of 128.
    Cp = ((C + 127) // 128) * 128
    # Pre-transpose weights so both matmuls are row-major A @ B (done once,
    # outside the kernel hot path).
    w1t = w1.T.astype(jnp.float32)                              # (F, H)
    w2t = jnp.zeros((H, Cp), jnp.float32).at[:, :C].set(w2.T)   # (H, Cp)
    b1r = b1.reshape(1, H).astype(jnp.float32)
    b2r = jnp.zeros((1, Cp), jnp.float32).at[0, :C].set(b2)

    # Batch tile: multiple of 8 (sublane); pad B to a whole number of tiles.
    tb = min(block_b, ((B + 7) // 8) * 8)
    Bp = ((B + tb - 1) // tb) * tb
    if Bp != B:
        x = jnp.zeros((Bp, F), x.dtype).at[:B].set(x)
    x = x.astype(jnp.float32)

    out = pl.pallas_call(
        mlp_kernel,
        out_shape=jax.ShapeDtypeStruct((Bp, Cp), jnp.float32),
        grid=(Bp // tb,),
        in_specs=[
            pl.BlockSpec((tb, F), lambda i: (i, 0)),    # x tile   (streamed)
            pl.BlockSpec((F, H), lambda i: (0, 0)),     # W1^T     (resident)
            pl.BlockSpec((1, H), lambda i: (0, 0)),     # b1       (resident)
            pl.BlockSpec((H, Cp), lambda i: (0, 0)),    # W2^T     (resident)
            pl.BlockSpec((1, Cp), lambda i: (0, 0)),    # b2       (resident)
        ],
        out_specs=pl.BlockSpec((tb, Cp), lambda i: (i, 0)),
        compiler_params=pltpu.CompilerParams(
            dimension_semantics=("parallel",),
        ),
    )(x, w1t, b1r, w2t, b2r)
    return out[:B, :C]


def mlp_ref(x, w1, b1, w2, b2):
    hp = jax.lax.Precision.HIGHEST
    z1 = jnp.dot(x, w1.T, precision=hp) + b1
    h = 0.5 * z1 * (1.0 + jnp.tanh(_SQRT_2_OVER_PI * (z1 + 0.044715 * z1 ** 3)))
    return jnp.dot(h, w2.T, precision=hp) + b2


if __name__ == "__main__":
    key = jax.random.PRNGKey(0)
    kx, k1, kb1, k2, kb2 = jax.random.split(key, 5)

    B, F, H, C = 16, 32, 512, 10   # hidden=512 is fixed by the module
    x = jax.random.normal(kx, (B, F), dtype=jnp.float32)
    w1 = jax.random.normal(k1, (H, F), dtype=jnp.float32) * 0.05
    b1 = jax.random.normal(kb1, (H,), dtype=jnp.float32) * 0.05
    w2 = jax.random.normal(k2, (C, H), dtype=jnp.float32) * 0.05
    b2 = jax.random.normal(kb2, (C,), dtype=jnp.float32) * 0.05

    out = jax.block_until_ready(mlp_forward(x, w1, b1, w2, b2))
    ref = mlp_ref(x, w1, b1, w2, b2)

    assert out.shape == (B, C)
    assert jnp.allclose(out, ref, atol=2e-3, rtol=2e-3), float(
        jnp.max(jnp.abs(out - ref)))

    print("KERNEL_OK")
</pallas_src>

<mosaic_0001>
module attributes {stable_mosaic.version = 11 : i64} {
  func.func @mlp_kernel(%arg0: i32, %arg1: memref<16x32xf32, #tpu.memory_space<vmem>>, %arg2: memref<32x512xf32, #tpu.memory_space<vmem>>, %arg3: memref<1x512xf32, #tpu.memory_space<vmem>>, %arg4: memref<512x128xf32, #tpu.memory_space<vmem>>, %arg5: memref<1x128xf32, #tpu.memory_space<vmem>>, %arg6: memref<16x128xf32, #tpu.memory_space<vmem>>) attributes {dimension_semantics = [#tpu.dimension_semantics<parallel>], iteration_bounds = array<i64: 1>, scalar_prefetch = 0 : i64, scratch_operands = 0 : i64, tpu.core_type = #tpu.core_type<tc>, window_params = [{transform_indices = @transform_0, window_bounds = array<i64: 16, 32>}, {pipeline_mode = #tpu.pipeline_mode<synchronous>, transform_indices = @transform_1, window_bounds = array<i64: 32, 512>}, {pipeline_mode = #tpu.pipeline_mode<synchronous>, transform_indices = @transform_2, window_bounds = array<i64: 1, 512>}, {pipeline_mode = #tpu.pipeline_mode<synchronous>, transform_indices = @transform_3, window_bounds = array<i64: 512, 128>}, {pipeline_mode = #tpu.pipeline_mode<synchronous>, transform_indices = @transform_4, window_bounds = array<i64: 1, 128>}, {transform_indices = @transform_5, window_bounds = array<i64: 16, 128>}]} {
    %c0 = arith.constant 0 : index
    %c0_0 = arith.constant 0 : index
    %0 = vector.load %arg1[%c0, %c0_0] : memref<16x32xf32, #tpu.memory_space<vmem>>, vector<16x32xf32>
    %c0_1 = arith.constant 0 : index
    %c0_2 = arith.constant 0 : index
    %1 = vector.load %arg2[%c0_1, %c0_2] : memref<32x512xf32, #tpu.memory_space<vmem>>, vector<32x512xf32>
    %cst = arith.constant dense<0.000000e+00> : vector<16x512xf32>
    %2 = tpu.matmul %0, %1, %cst {dimension_numbers = #tpu.dot_dimension_numbers<[1], [0], [0], [1], [0, 0, 1, 1], [], []>} : vector<16x32xf32>, vector<32x512xf32>, vector<16x512xf32> -> vector<16x512xf32>
    %c0_3 = arith.constant 0 : index
    %c0_4 = arith.constant 0 : index
    %3 = vector.load %arg3[%c0_3, %c0_4] : memref<1x512xf32, #tpu.memory_space<vmem>>, vector<1x512xf32>
    %4 = vector.broadcast %3 : vector<1x512xf32> to vector<16x512xf32>
    %5 = arith.addf %2, %4 : vector<16x512xf32>
    %cst_5 = arith.constant 5.000000e-01 : f32
    %6 = vector.broadcast %cst_5 : f32 to vector<16x512xf32>
    %7 = arith.mulf %6, %5 : vector<16x512xf32>
    %cst_6 = arith.constant 4.471500e-02 : f32
    %8 = vector.broadcast %cst_6 : f32 to vector<16x512xf32>
    %9 = arith.mulf %8, %5 : vector<16x512xf32>
    %10 = arith.mulf %9, %5 : vector<16x512xf32>
    %11 = arith.mulf %10, %5 : vector<16x512xf32>
    %12 = arith.addf %5, %11 : vector<16x512xf32>
    %cst_7 = arith.constant 0.797884583 : f32
    %13 = vector.broadcast %cst_7 : f32 to vector<16x512xf32>
    %14 = arith.mulf %13, %12 : vector<16x512xf32>
    %15 = math.tanh %14 : vector<16x512xf32>
    %cst_8 = arith.constant 1.000000e+00 : f32
    %16 = vector.broadcast %cst_8 : f32 to vector<16x512xf32>
    %17 = arith.addf %16, %15 : vector<16x512xf32>
    %18 = arith.mulf %7, %17 : vector<16x512xf32>
    %c0_9 = arith.constant 0 : index
    %c0_10 = arith.constant 0 : index
    %19 = vector.load %arg4[%c0_9, %c0_10] : memref<512x128xf32, #tpu.memory_space<vmem>>, vector<512x128xf32>
    %cst_11 = arith.constant dense<0.000000e+00> : vector<16x128xf32>
    %20 = tpu.matmul %18, %19, %cst_11 {dimension_numbers = #tpu.dot_dimension_numbers<[1], [0], [0], [1], [0, 0, 1, 1], [], []>} : vector<16x512xf32>, vector<512x128xf32>, vector<16x128xf32> -> vector<16x128xf32>
    %c0_12 = arith.constant 0 : index
    %c0_13 = arith.constant 0 : index
    %21 = vector.load %arg5[%c0_12, %c0_13] : memref<1x128xf32, #tpu.memory_space<vmem>>, vector<1x128xf32>
    %22 = vector.broadcast %21 : vector<1x128xf32> to vector<16x128xf32>
    %23 = arith.addf %20, %22 : vector<16x128xf32>
    %c0_14 = arith.constant 0 : index
    %c0_15 = arith.constant 0 : index
    %24 = vector.load %arg6[%c0_14, %c0_15] : memref<16x128xf32, #tpu.memory_space<vmem>>, vector<16x128xf32>
    tpu.vector_store %arg6[%c0_14, %c0_15], %23 {strides = array<i32>} : memref<16x128xf32, #tpu.memory_space<vmem>>, vector<16x128xf32>,
    return
  }
  func.func @transform_0(%arg0: i32) -> (i32, i32) {
    %c0_i32 = arith.constant 0 : i32
    %c0_i32_0 = arith.constant 0 : i32
    return %arg0, %c0_i32 : i32, i32
  }
  func.func @transform_1(%arg0: i32) -> (i32, i32) {
    %c0_i32 = arith.constant 0 : i32
    %c0_i32_0 = arith.constant 0 : i32
    %c0_i32_1 = arith.constant 0 : i32
    return %c0_i32, %c0_i32_0 : i32, i32
  }
  func.func @transform_2(%arg0: i32) -> (i32, i32) {
    %c0_i32 = arith.constant 0 : i32
    %c0_i32_0 = arith.constant 0 : i32
    %c0_i32_1 = arith.constant 0 : i32
    return %c0_i32, %c0_i32_0 : i32, i32
  }
  func.func @transform_3(%arg0: i32) -> (i32, i32) {
    %c0_i32 = arith.constant 0 : i32
    %c0_i32_0 = arith.constant 0 : i32
    %c0_i32_1 = arith.constant 0 : i32
    return %c0_i32, %c0_i32_0 : i32, i32
  }
  func.func @transform_4(%arg0: i32) -> (i32, i32) {
    %c0_i32 = arith.constant 0 : i32
    %c0_i32_0 = arith.constant 0 : i32
    %c0_i32_1 = arith.constant 0 : i32
    return %c0_i32, %c0_i32_0 : i32, i32
  }
  func.func @transform_5(%arg0: i32) -> (i32, i32) {
    %c0_i32 = arith.constant 0 : i32
    %c0_i32_0 = arith.constant 0 : i32
    return %arg0, %c0_i32 : i32, i32
  }
}

</mosaic_0001>

<llo_original>
// kernel: mlp_forward.1
$region0: #{mlp_forward.1}
  #allocation0 [shape = 'u32[]', space=smem, size = 0x4, offset = 0x4, fixed_abs, tag = 'smem constant byte address 0x4 - core index']
  #allocation1 [shape = 'u32[144,128]{1,0:T(1,128)}', space=vmem, size = 0x12000, scoped, tag = 'internal scratch']
  %s0 = inlined_call_operand.vmem [shape: f32[16,32], index: 0, kind: input, shape index: {}]
  %s1 = inlined_call_operand.vmem [shape: f32[32,512], index: 1, kind: input, shape index: {}]
  %s2 = inlined_call_operand.vmem [shape: f32[1,512], index: 2, kind: input, shape index: {}]
  %s3 = inlined_call_operand.vmem [shape: f32[512,128], index: 3, kind: input, shape index: {}]
  %s4 = inlined_call_operand.vmem [shape: f32[1,128], index: 4, kind: input, shape index: {}]
  %s5 = inlined_call_operand.hbm [shape: f32[16,128], index: 5, kind: output, shape index: {}]
  %s6 = sld [smem:[#allocation0]]
  $region30: #{mlp_forward.1} parent=0
    _
  %s8 = ssub.s32 1, %s6
  %s9 = scalar_select 0, %s8, %s6
  $region1: #{mlp_forward.1} parent=0
    #allocation2 [shape = 'u8[8192]{0}', space=vmem, size = 0x2000, scoped, tag = 'output window, operand 0, single buffered']
    #allocation3 [shape = 's32[1]{0}', space=sflag, size = 0x4, scoped, tag = 'scoped memory for mlp_forward.1']
    %10 = vsyncpa [#allocation3], 0
    // Predicated region
    $region2: #{mlp_forward.1} parent=1 // pred_check
      _
    $region3: #{mlp_forward.1} parent=1 // pred_check_branch
      %12 = sbr.rel (0) target = $region5
    $region4: #{mlp_forward.1} parent=1 // pred_region
      _
    $region5: #{mlp_forward.1} parent=1 // pred_fallthru
      _
    // Predicated region
    $region6: #{mlp_forward.1} parent=1 // pred_check
      _
    $region7: #{mlp_forward.1} parent=1 // pred_check_branch
      %14 = sbr.rel (0) target = $region9
    $region8: #{mlp_forward.1} parent=1 // pred_region
      _
    $region9: #{mlp_forward.1} parent=1 // pred_fallthru
      _
    // Predicated region
    $region10: #{mlp_forward.1} parent=1 // pred_check
      _
    $region11: #{mlp_forward.1} parent=1 // pred_check_branch
      %16 = sbr.rel (0) target = $region13
    $region12: #{mlp_forward.1} parent=1 // pred_region
      _
    $region13: #{mlp_forward.1} parent=1 // pred_fallthru
      _
    // Predicated region
    $region14: #{mlp_forward.1} parent=1 // pred_check
      _
    $region15: #{mlp_forward.1} parent=1 // pred_check_branch
      %18 = sbr.rel (0) target = $region17
    $region16: #{mlp_forward.1} parent=1 // pred_region
      _
    $region17: #{mlp_forward.1} parent=1 // pred_fallthru
      _
    // Predicated region
    $region18: #{mlp_forward.1} parent=1 // pred_check
      _
    $region19: #{mlp_forward.1} parent=1 // pred_check_branch
      %20 = sbr.rel (0) target = $region21
    $region20: #{mlp_forward.1} parent=1 // pred_region
      _
    $region21: #{mlp_forward.1} parent=1 // pred_fallthru
      _
    %v21 = vld [vmem:[%s0] sm:$0xff]
    %v22 = vld [vmem:[%s0 + $0x8] sm:$0xff]
    %v23 = vld [vmem:[%s1] sm:$0xff]
    %v24 = vld [vmem:[%s1 + $0x8] sm:$0xff]
    %v25 = vld [vmem:[%s1 + $0x10] sm:$0xff]
    %v26 = vld [vmem:[%s1 + $0x18] sm:$0xff]
    %v27 = vld [vmem:[%s1 + $0x20] sm:$0xff]
    %v28 = vld [vmem:[%s1 + $0x28] sm:$0xff]
    %v29 = vld [vmem:[%s1 + $0x30] sm:$0xff]
    %v30 = vld [vmem:[%s1 + $0x38] sm:$0xff]
    %v31 = vld [vmem:[%s1 + $0x40] sm:$0xff]
    %v32 = vld [vmem:[%s1 + $0x48] sm:$0xff]
    %v33 = vld [vmem:[%s1 + $0x50] sm:$0xff]
    %v34 = vld [vmem:[%s1 + $0x58] sm:$0xff]
    %v35 = vld [vmem:[%s1 + $0x60] sm:$0xff]
    %v36 = vld [vmem:[%s1 + $0x68] sm:$0xff]
    %v37 = vld [vmem:[%s1 + $0x70] sm:$0xff]
    %v38 = vld [vmem:[%s1 + $0x78] sm:$0xff]
    %v39 = vld [vmem:[%s2] sm:$0xf]
    %v41 = vlaneseq
    %v42 = vshrl.u32 %v41, 7
    %v43 = vsub.s32 0, %v42
    %v44 = vrot.slane %v39, %v43
    %v45 = vlaneseq
    %v46 = vshrl.u32 %v45, 7
    %v47 = vsub.s32 1, %v46
    %v48 = vrot.slane %v39, %v47
    %v49 = vlaneseq
    %v50 = vshrl.u32 %v49, 7
    %v51 = vsub.s32 2, %v50
    %v52 = vrot.slane %v39, %v51
    %v53 = vlaneseq
    %v54 = vshrl.u32 %v53, 7
    %v55 = vsub.s32 3, %v54
    %v56 = vrot.slane %v39, %v55
    %vm61 = vcmask 261120
    %v63 = vsel %vm61, %v21, 0
    %v66 = vsel %vm61, %v22, 0
    %68 = vmatprep.subr.mxu0 0.0
    %69 = vmatpush1.msra.mxu0 0.0
    %70 = vmatprep.subr.mxu0 0.0
    %71 = vmatpush1.msra.mxu0 0.0
    %72 = vmatprep.subr.mxu0 0.0
    %73 = vmatpush1.msra.mxu0 0.0
    %74 = vmatprep.subr.mxu0 0.0
    %75 = vmatpush1.msra.mxu0 0.0
    %76 = vmatprep.subr.mxu0 0.0
    %77 = vmatpush1.msra.mxu0 0.0
    %78 = vmatprep.subr.mxu0 0.0
    %79 = vmatpush1.msra.mxu0 0.0
    %80 = vmatprep.subr.mxu0 0.0
    %81 = vmatpush1.msra.mxu0 0.0
    %82 = vmatprep.subr.mxu0 0.0
    %83 = vmatpush1.msra.mxu0 0.0
    %84 = vmatprep.subr.mxu0 0.0
    %85 = vmatpush1.msra.mxu0 0.0
    %86 = vmatprep.subr.mxu0 0.0
    %87 = vmatpush1.msra.mxu0 0.0
    %88 = vmatprep.subr.mxu0 0.0
    %89 = vmatpush1.msra.mxu0 0.0
    %90 = vmatprep.subr.mxu0 0.0
    %91 = vmatpush1.msra.mxu0 0.0
    %92 = vmatprep.subr.mxu0 %v36
    %93 = vmatpush1.msra.mxu0 %v35
    %94 = vmatprep.subr.mxu0 %v32
    %95 = vmatpush1.msra.mxu0 %v31
    %96 = vmatprep.subr.mxu0 %v28
    %97 = vmatpush1.msra.mxu0 %v27
    %98 = vmatprep.subr.mxu0 %v24
    %99 = vmatpush1.msra.mxu0 %v23
    %100 = vmatprep.subr.mxu0 0.0
    %101 = vmatpush2.msra.mxu0 0.0
    %102 = vmatprep.subr.mxu0 0.0
    %103 = vmatpush2.msra.mxu0 0.0
    %104 = vmatprep.subr.mxu0 0.0
    %105 = vmatpush2.msra.mxu0 0.0
    %106 = vmatprep.subr.mxu0 0.0
    %107 = vmatpush2.msra.mxu0 0.0
    %108 = vmatprep.subr.mxu0 0.0
    %109 = vmatpush2.msra.mxu0 0.0
    %110 = vmatprep.subr.mxu0 0.0
    %111 = vmatpush2.msra.mxu0 0.0
    %112 = vmatprep.subr.mxu0 0.0
    %113 = vmatpush2.msra.mxu0 0.0
    %114 = vmatprep.subr.mxu0 0.0
    %115 = vmatpush2.msra.mxu0 0.0
    %116 = vmatprep.subr.mxu0 0.0
    %117 = vmatpush2.msra.mxu0 0.0
    %118 = vmatprep.subr.mxu0 0.0
    %119 = vmatpush2.msra.mxu0 0.0
    %120 = vmatprep.subr.mxu0 0.0
    %121 = vmatpush2.msra.mxu0 0.0
    %122 = vmatprep.subr.mxu0 0.0
    %123 = vmatpush2.msra.mxu0 0.0
    %124 = vmatprep.subr.mxu0 0.0
    %125 = vmatpush2.msra.mxu0 0.0
    %126 = vmatprep.subr.mxu0 0.0
    %127 = vmatpush2.msra.mxu0 0.0
    %128 = vmatprep.subr.mxu0 0.0
    %129 = vmatpush2.msra.mxu0 0.0
    %130 = vmatprep.subr.mxu0 0.0
    %131 = vmatpush2.msra.mxu0 0.0
    %132 = vmatprep.mubr.f32.mxu0 0.0
    %133 = vmatmul.mubr.f32.gmra.mxu0 %v63
    %v134 = vpop.f32.mrf.mxu0
    %v135 = vadd.f32 %v44, %v134
    %v136 = vpop.f32.mrf.mxu0
    %v137 = vadd.f32 %v48, %v136
    %138 = vmatprep.mubr.f32.mxu0 0.0
    %139 = vmatmul.mubr.f32.gmra.mxu0 %v66
    %v140 = vpop.f32.mrf.mxu0
    %v141 = vadd.f32 %v44, %v140
    %v142 = vpop.f32.mrf.mxu0
    %v143 = vadd.f32 %v48, %v142
    %144 = vdwg.mxu0
    %145 = vmatprep.subr.mxu0 0.0
    %146 = vmatpush1.msra.mxu0 0.0
    %147 = vmatprep.subr.mxu0 0.0
    %148 = vmatpush1.msra.mxu0 0.0
    %149 = vmatprep.subr.mxu0 0.0
    %150 = vmatpush1.msra.mxu0 0.0
    %151 = vmatprep.subr.mxu0 0.0
    %152 = vmatpush1.msra.mxu0 0.0
    %153 = vmatprep.subr.mxu0 0.0
    %154 = vmatpush1.msra.mxu0 0.0
    %155 = vmatprep.subr.mxu0 0.0
    %156 = vmatpush1.msra.mxu0 0.0
    %157 = vmatprep.subr.mxu0 0.0
    %158 = vmatpush1.msra.mxu0 0.0
    %159 = vmatprep.subr.mxu0 0.0
    %160 = vmatpush1.msra.mxu0 0.0
    %161 = vmatprep.subr.mxu0 0.0
    %162 = vmatpush1.msra.mxu0 0.0
    %163 = vmatprep.subr.mxu0 0.0
    %164 = vmatpush1.msra.mxu0 0.0
    %165 = vmatprep.subr.mxu0 0.0
    %166 = vmatpush1.msra.mxu0 0.0
    %167 = vmatprep.subr.mxu0 0.0
    %168 = vmatpush1.msra.mxu0 0.0
    %169 = vmatprep.subr.mxu0 %v38
    %170 = vmatpush1.msra.mxu0 %v37
    %171 = vmatprep.subr.mxu0 %v34
    %172 = vmatpush1.msra.mxu0 %v33
    %173 = vmatprep.subr.mxu0 %v30
    %174 = vmatpush1.msra.mxu0 %v29
    %175 = vmatprep.subr.mxu0 %v26
    %176 = vmatpush1.msra.mxu0 %v25
    %177 = vmatprep.subr.mxu0 0.0
    %178 = vmatpush2.msra.mxu0 0.0
    %179 = vmatprep.subr.mxu0 0.0
    %180 = vmatpush2.msra.mxu0 0.0
    %181 = vmatprep.subr.mxu0 0.0
    %182 = vmatpush2.msra.mxu0 0.0
    %183 = vmatprep.subr.mxu0 0.0
    %184 = vmatpush2.msra.mxu0 0.0
    %185 = vmatprep.subr.mxu0 0.0
    %186 = vmatpush2.msra.mxu0 0.0
    %187 = vmatprep.subr.mxu0 0.0
    %188 = vmatpush2.msra.mxu0 0.0
    %189 = vmatprep.subr.mxu0 0.0
    %190 = vmatpush2.msra.mxu0 0.0
    %191 = vmatprep.subr.mxu0 0.0
    %192 = vmatpush2.msra.mxu0 0.0
    %193 = vmatprep.subr.mxu0 0.0
    %194 = vmatpush2.msra.mxu0 0.0
    %195 = vmatprep.subr.mxu0 0.0
    %196 = vmatpush2.msra.mxu0 0.0
    %197 = vmatprep.subr.mxu0 0.0
    %198 = vmatpush2.msra.mxu0 0.0
    %199 = vmatprep.subr.mxu0 0.0
    %200 = vmatpush2.msra.mxu0 0.0
    %201 = vmatprep.subr.mxu0 0.0
    %202 = vmatpush2.msra.mxu0 0.0
    %203 = vmatprep.subr.mxu0 0.0
    %204 = vmatpush2.msra.mxu0 0.0
    %205 = vmatprep.subr.mxu0 0.0
    %206 = vmatpush2.msra.mxu0 0.0
    %207 = vmatprep.subr.mxu0 0.0
    %208 = vmatpush2.msra.mxu0 0.0
    %209 = vmatprep.mubr.f32.mxu0 0.0
    %210 = vmatmul.mubr.f32.gmra.mxu0 %v63
    %v211 = vpop.f32.mrf.mxu0
    %v212 = vadd.f32 %v52, %v211
    %v213 = vpop.f32.mrf.mxu0
    %v214 = vadd.f32 %v56, %v213
    %215 = vmatprep.mubr.f32.mxu0 0.0
    %216 = vmatmul.mubr.f32.gmra.mxu0 %v66
    %v217 = vpop.f32.mrf.mxu0
    %v218 = vadd.f32 %v52, %v217
    %v219 = vpop.f32.mrf.mxu0
    %v220 = vadd.f32 %v56, %v219
    %221 = vdwg.mxu0
    %v222 = vmul.f32 %v135, 0.5
    %v223 = vmul.f32 %v137, 0.5
    %v224 = vmul.f32 %v212, 0.5
    %v225 = vmul.f32 %v214, 0.5
    %v226 = vmul.f32 %v141, 0.5
    %v227 = vmul.f32 %v143, 0.5
    %v228 = vmul.f32 %v218, 0.5
    %v229 = vmul.f32 %v220, 0.5
    %v230 = vmul.f32 %v135, 0.044715
    %v231 = vmul.f32 %v137, 0.044715
    %v232 = vmul.f32 %v212, 0.044715
    %v233 = vmul.f32 %v214, 0.044715
    %v234 = vmul.f32 %v141, 0.044715
    %v235 = vmul.f32 %v143, 0.044715
    %v236 = vmul.f32 %v218, 0.044715
    %v237 = vmul.f32 %v220, 0.044715
    %v238 = vmul.f32 %v230, %v135
    %v239 = vmul.f32 %v231, %v137
    %v240 = vmul.f32 %v232, %v212
    %v241 = vmul.f32 %v233, %v214
    %v242 = vmul.f32 %v234, %v141
    %v243 = vmul.f32 %v235, %v143
    %v244 = vmul.f32 %v236, %v218
    %v245 = vmul.f32 %v237, %v220
    %v246 = vmul.f32 %v238, %v135
    %v247 = vmul.f32 %v239, %v137
    %v248 = vmul.f32 %v240, %v212
    %v249 = vmul.f32 %v241, %v214
    %v250 = vmul.f32 %v242, %v141
    %v251 = vmul.f32 %v243, %v143
    %v252 = vmul.f32 %v244, %v218
    %v253 = vmul.f32 %v245, %v220
    %v254 = vadd.f32 %v135, %v246
    %v255 = vadd.f32 %v137, %v247
    %v256 = vadd.f32 %v212, %v248
    %v257 = vadd.f32 %v214, %v249
    %v258 = vadd.f32 %v141, %v250
    %v259 = vadd.f32 %v143, %v251
    %v260 = vadd.f32 %v218, %v252
    %v261 = vadd.f32 %v220, %v253
    %v262 = vmul.f32 %v254, 0.7978846
    %v263 = vmul.f32 %v255, 0.7978846
    %v264 = vmul.f32 %v256, 0.7978846
    %v265 = vmul.f32 %v257, 0.7978846
    %v266 = vmul.f32 %v258, 0.7978846
    %v267 = vmul.f32 %v259, 0.7978846
    %v268 = vmul.f32 %v260, 0.7978846
    %v269 = vmul.f32 %v261, 0.7978846
    %v270 = vtanh.pop %v262
    %v271 = vtanh.pop %v263
    %v272 = vtanh.pop %v264
    %v273 = vtanh.pop %v265
    %v274 = vtanh.pop %v266
    %v275 = vtanh.pop %v267
    %v276 = vtanh.pop %v268
    %v277 = vtanh.pop %v269
    %v278 = vadd.f32 %v270, 1.0
    %v279 = vadd.f32 %v271, 1.0
    %v280 = vadd.f32 %v272, 1.0
    %v281 = vadd.f32 %v273, 1.0
    %v282 = vadd.f32 %v274, 1.0
    %v283 = vadd.f32 %v275, 1.0
    %v284 = vadd.f32 %v276, 1.0
    %v285 = vadd.f32 %v277, 1.0
    %v286 = vmul.f32 %v222, %v278
    %v287 = vmul.f32 %v223, %v279
    %v288 = vmul.f32 %v224, %v280
    %v289 = vmul.f32 %v225, %v281
    %v290 = vmul.f32 %v226, %v282
    %v291 = vmul.f32 %v227, %v283
    %v292 = vmul.f32 %v228, %v284
    %v293 = vmul.f32 %v229, %v285
    %v294 = vld [vmem:[%s3] sm:$0xff]
    %v295 = vld [vmem:[%s3 + $0x8] sm:$0xff]
    %v296 = vld [vmem:[%s3 + $0x10] sm:$0xff]
    %v297 = vld [vmem:[%s3 + $0x18] sm:$0xff]
    %v298 = vld [vmem:[%s3 + $0x20] sm:$0xff]
    %v299 = vld [vmem:[%s3 + $0x28] sm:$0xff]
    %v300 = vld [vmem:[%s3 + $0x30] sm:$0xff]
    %v301 = vld [vmem:[%s3 + $0x38] sm:$0xff]
    %v302 = vld [vmem:[%s3 + $0x40] sm:$0xff]
    %v303 = vld [vmem:[%s3 + $0x48] sm:$0xff]
    %v304 = vld [vmem:[%s3 + $0x50] sm:$0xff]
    %v305 = vld [vmem:[%s3 + $0x58] sm:$0xff]
    %v306 = vld [vmem:[%s3 + $0x60] sm:$0xff]
    %v307 = vld [vmem:[%s3 + $0x68] sm:$0xff]
    %v308 = vld [vmem:[%s3 + $0x70] sm:$0xff]
    %v309 = vld [vmem:[%s3 + $0x78] sm:$0xff]
    %v310 = vld [vmem:[%s3 + $0x80] sm:$0xff]
    %v311 = vld [vmem:[%s3 + $0x88] sm:$0xff]
    %v312 = vld [vmem:[%s3 + $0x90] sm:$0xff]
    %v313 = vld [vmem:[%s3 + $0x98] sm:$0xff]
    %v314 = vld [vmem:[%s3 + $0xa0] sm:$0xff]
    %v315 = vld [vmem:[%s3 + $0xa8] sm:$0xff]
    %v316 = vld [vmem:[%s3 + $0xb0] sm:$0xff]
    %v317 = vld [vmem:[%s3 + $0xb8] sm:$0xff]
    %v318 = vld [vmem:[%s3 + $0xc0] sm:$0xff]
    %v319 = vld [vmem:[%s3 + $0xc8] sm:$0xff]
    %v320 = vld [vmem:[%s3 + $0xd0] sm:$0xff]
    %v321 = vld [vmem:[%s3 + $0xd8] sm:$0xff]
    %v322 = vld [vmem:[%s3 + $0xe0] sm:$0xff]
    %v323 = vld [vmem:[%s3 + $0xe8] sm:$0xff]
    %v324 = vld [vmem:[%s3 + $0xf0] sm:$0xff]
    %v325 = vld [vmem:[%s3 + $0xf8] sm:$0xff]
    %v326 = vld [vmem:[%s3 + $0x100] sm:$0xff]
    %v327 = vld [vmem:[%s3 + $0x108] sm:$0xff]
    %v328 = vld [vmem:[%s3 + $0x110] sm:$0xff]
    %v329 = vld [vmem:[%s3 + $0x118] sm:$0xff]
    %v330 = vld [vmem:[%s3 + $0x120] sm:$0xff]
    %v331 = vld [vmem:[%s3 + $0x128] sm:$0xff]
    %v332 = vld [vmem:[%s3 + $0x130] sm:$0xff]
    %v333 = vld [vmem:[%s3 + $0x138] sm:$0xff]
    %v334 = vld [vmem:[%s3 + $0x140] sm:$0xff]
    %v335 = vld [vmem:[%s3 + $0x148] sm:$0xff]
    %v336 = vld [vmem:[%s3 + $0x150] sm:$0xff]
    %v337 = vld [vmem:[%s3 + $0x158] sm:$0xff]
    %v338 = vld [vmem:[%s3 + $0x160] sm:$0xff]
    %v339 = vld [vmem:[%s3 + $0x168] sm:$0xff]
    %v340 = vld [vmem:[%s3 + $0x170] sm:$0xff]
    %v341 = vld [vmem:[%s3 + $0x178] sm:$0xff]
    %v342 = vld [vmem:[%s3 + $0x180] sm:$0xff]
    %v343 = vld [vmem:[%s3 + $0x188] sm:$0xff]
    %v344 = vld [vmem:[%s3 + $0x190] sm:$0xff]
    %v345 = vld [vmem:[%s3 + $0x198] sm:$0xff]
    %v346 = vld [vmem:[%s3 + $0x1a0] sm:$0xff]
    %v347 = vld [vmem:[%s3 + $0x1a8] sm:$0xff]
    %v348 = vld [vmem:[%s3 + $0x1b0] sm:$0xff]
    %v349 = vld [vmem:[%s3 + $0x1b8] sm:$0xff]
    %v350 = vld [vmem:[%s3 + $0x1c0] sm:$0xff]
    %v351 = vld [vmem:[%s3 + $0x1c8] sm:$0xff]
    %v352 = vld [vmem:[%s3 + $0x1d0] sm:$0xff]
    %v353 = vld [vmem:[%s3 + $0x1d8] sm:$0xff]
    %v354 = vld [vmem:[%s3 + $0x1e0] sm:$0xff]
    %v355 = vld [vmem:[%s3 + $0x1e8] sm:$0xff]
    %v356 = vld [vmem:[%s3 + $0x1f0] sm:$0xff]
    %v357 = vld [vmem:[%s3 + $0x1f8] sm:$0xff]
    %v358 = vld [vmem:[%s4] sm:$0x1]
    %v360 = vlaneseq
    %v361 = vshrl.u32 %v360, 7
    %v362 = vsub.s32 0, %v361
    %v363 = vrot.slane %v358, %v362
    %365 = vmatprep.subr.mxu0 0.0
    %366 = vmatpush1.msra.mxu0 %v309
    %367 = vmatprep.subr.mxu0 0.0
    %368 = vmatpush1.msra.mxu0 %v308
    %369 = vmatprep.subr.mxu0 0.0
    %370 = vmatpush1.msra.mxu0 %v307
    %371 = vmatprep.subr.mxu0 0.0
    %372 = vmatpush1.msra.mxu0 %v306
    %373 = vmatprep.subr.mxu0 0.0
    %374 = vmatpush1.msra.mxu0 %v305
    %375 = vmatprep.subr.mxu0 0.0
    %376 = vmatpush1.msra.mxu0 %v304
    %377 = vmatprep.subr.mxu0 0.0
    %378 = vmatpush1.msra.mxu0 %v303
    %379 = vmatprep.subr.mxu0 0.0
    %380 = vmatpush1.msra.mxu0 %v302
    %381 = vmatprep.subr.mxu0 0.0
    %382 = vmatpush1.msra.mxu0 %v301
    %383 = vmatprep.subr.mxu0 0.0
    %384 = vmatpush1.msra.mxu0 %v300
    %385 = vmatprep.subr.mxu0 0.0
    %386 = vmatpush1.msra.mxu0 %v299
    %387 = vmatprep.subr.mxu0 0.0
    %388 = vmatpush1.msra.mxu0 %v298
    %389 = vmatprep.subr.mxu0 0.0
    %390 = vmatpush1.msra.mxu0 %v297
    %391 = vmatprep.subr.mxu0 0.0
    %392 = vmatpush1.msra.mxu0 %v296
    %393 = vmatprep.subr.mxu0 0.0
    %394 = vmatpush1.msra.mxu0 %v295
    %395 = vmatprep.subr.mxu0 0.0
    %396 = vmatpush1.msra.mxu0 %v294
    %397 = vmatprep.subr.mxu0 0.0
    %398 = vmatpush2.msra.mxu0 %v325
    %399 = vmatprep.subr.mxu0 0.0
    %400 = vmatpush2.msra.mxu0 %v324
    %401 = vmatprep.subr.mxu0 0.0
    %402 = vmatpush2.msra.mxu0 %v323
    %403 = vmatprep.subr.mxu0 0.0
    %404 = vmatpush2.msra.mxu0 %v322
    %405 = vmatprep.subr.mxu0 0.0
    %406 = vmatpush2.msra.mxu0 %v321
    %407 = vmatprep.subr.mxu0 0.0
    %408 = vmatpush2.msra.mxu0 %v320
    %409 = vmatprep.subr.mxu0 0.0
    %410 = vmatpush2.msra.mxu0 %v319
    %411 = vmatprep.subr.mxu0 0.0
    %412 = vmatpush2.msra.mxu0 %v318
    %413 = vmatprep.subr.mxu0 0.0
    %414 = vmatpush2.msra.mxu0 %v317
    %415 = vmatprep.subr.mxu0 0.0
    %416 = vmatpush2.msra.mxu0 %v316
    %417 = vmatprep.subr.mxu0 0.0
    %418 = vmatpush2.msra.mxu0 %v315
    %419 = vmatprep.subr.mxu0 0.0
    %420 = vmatpush2.msra.mxu0 %v314
    %421 = vmatprep.subr.mxu0 0.0
    %422 = vmatpush2.msra.mxu0 %v313
    %423 = vmatprep.subr.mxu0 0.0
    %424 = vmatpush2.msra.mxu0 %v312
    %425 = vmatprep.subr.mxu0 0.0
    %426 = vmatpush2.msra.mxu0 %v311
    %427 = vmatprep.subr.mxu0 0.0
    %428 = vmatpush2.msra.mxu0 %v310
    %429 = vmatprep.mubr.f32.mxu0 %v287
    %430 = vmatmul.mubr.f32.gmra.mxu0 %v286
    %v431 = vpop.f32.mrf.mxu0
    %v432 = vadd.f32 %v363, %v431
    %v433 = vpop.f32.mrf.mxu0
    %434 = vmatprep.mubr.f32.mxu0 %v291
    %435 = vmatmul.mubr.f32.gmra.mxu0 %v290
    %v436 = vpop.f32.mrf.mxu0
    %v437 = vadd.f32 %v363, %v436
    %v438 = vpop.f32.mrf.mxu0
    %439 = vdwg.mxu0
    %440 = vmatprep.subr.mxu0 0.0
    %441 = vmatpush1.msra.mxu0 %v341
    %442 = vmatprep.subr.mxu0 0.0
    %443 = vmatpush1.msra.mxu0 %v340
    %444 = vmatprep.subr.mxu0 0.0
    %445 = vmatpush1.msra.mxu0 %v339
    %446 = vmatprep.subr.mxu0 0.0
    %447 = vmatpush1.msra.mxu0 %v338
    %448 = vmatprep.subr.mxu0 0.0
    %449 = vmatpush1.msra.mxu0 %v337
    %450 = vmatprep.subr.mxu0 0.0
    %451 = vmatpush1.msra.mxu0 %v336
    %452 = vmatprep.subr.mxu0 0.0
    %453 = vmatpush1.msra.mxu0 %v335
    %454 = vmatprep.subr.mxu0 0.0
    %455 = vmatpush1.msra.mxu0 %v334
    %456 = vmatprep.subr.mxu0 0.0
    %457 = vmatpush1.msra.mxu0 %v333
    %458 = vmatprep.subr.mxu0 0.0
    %459 = vmatpush1.msra.mxu0 %v332
    %460 = vmatprep.subr.mxu0 0.0
    %461 = vmatpush1.msra.mxu0 %v331
    %462 = vmatprep.subr.mxu0 0.0
    %463 = vmatpush1.msra.mxu0 %v330
    %464 = vmatprep.subr.mxu0 0.0
    %465 = vmatpush1.msra.mxu0 %v329
    %466 = vmatprep.subr.mxu0 0.0
    %467 = vmatpush1.msra.mxu0 %v328
    %468 = vmatprep.subr.mxu0 0.0
    %469 = vmatpush1.msra.mxu0 %v327
    %470 = vmatprep.subr.mxu0 0.0
    %471 = vmatpush1.msra.mxu0 %v326
    %472 = vmatprep.subr.mxu0 0.0
    %473 = vmatpush2.msra.mxu0 %v357
    %474 = vmatprep.subr.mxu0 0.0
    %475 = vmatpush2.msra.mxu0 %v356
    %476 = vmatprep.subr.mxu0 0.0
    %477 = vmatpush2.msra.mxu0 %v355
    %478 = vmatprep.subr.mxu0 0.0
    %479 = vmatpush2.msra.mxu0 %v354
    %480 = vmatprep.subr.mxu0 0.0
    %481 = vmatpush2.msra.mxu0 %v353
    %482 = vmatprep.subr.mxu0 0.0
    %483 = vmatpush2.msra.mxu0 %v352
    %484 = vmatprep.subr.mxu0 0.0
    %485 = vmatpush2.msra.mxu0 %v351
    %486 = vmatprep.subr.mxu0 0.0
    %487 = vmatpush2.msra.mxu0 %v350
    %488 = vmatprep.subr.mxu0 0.0
    %489 = vmatpush2.msra.mxu0 %v349
    %490 = vmatprep.subr.mxu0 0.0
    %491 = vmatpush2.msra.mxu0 %v348
    %492 = vmatprep.subr.mxu0 0.0
    %493 = vmatpush2.msra.mxu0 %v347
    %494 = vmatprep.subr.mxu0 0.0
    %495 = vmatpush2.msra.mxu0 %v346
    %496 = vmatprep.subr.mxu0 0.0
    %497 = vmatpush2.msra.mxu0 %v345
    %498 = vmatprep.subr.mxu0 0.0
    %499 = vmatpush2.msra.mxu0 %v344
    %500 = vmatprep.subr.mxu0 0.0
    %501 = vmatpush2.msra.mxu0 %v343
    %502 = vmatprep.subr.mxu0 0.0
    %503 = vmatpush2.msra.mxu0 %v342
    %504 = vmatprep.mubr.f32.mxu0 %v289
    %505 = vmatmul.mubr.f32.gmra.mxu0 %v288
    %v506 = vpop.f32.mrf.mxu0
    %v507 = vadd.f32 %v432, %v506
    %v508 = vpop.f32.mrf.mxu0
    %509 = vmatprep.mubr.f32.mxu0 %v293
    %510 = vmatmul.mubr.f32.gmra.mxu0 %v292
    %v511 = vpop.f32.mrf.mxu0
    %v512 = vadd.f32 %v437, %v511
    %v513 = vpop.f32.mrf.mxu0
    %514 = vdwg.mxu0
    %515 = vst [vmem:[#allocation2] sm:$0xff] %v507
    %516 = vst [vmem:[#allocation2 + $0x8] sm:$0xff] %v512
    // Predicated region
    $region22: #{mlp_forward.1} parent=1 // pred_check
      _
    $region23: #{mlp_forward.1} parent=1 // pred_check_branch
      %518 = sbr.rel (0) target = $region25
    $region24: #{mlp_forward.1} parent=1 // pred_region
      %s520 = ssub.s32 256, 256
      %521 = vsyncadd [#allocation3], %s520
      %s522 = sshll.u32 [#allocation2], 4
      %s523 = int_to_ptr.vmem [resolvable:$true] %s522
      %528 = dma.vmem_to_hbm [thread:$0]  %s523, 256, %s5, [#allocation3], 128, 128, 8
    $region25: #{mlp_forward.1} parent=1 // pred_fallthru
      _
    // Predicated region
    $region26: #{mlp_forward.1} parent=1 // pred_check
      _
    $region27: #{mlp_forward.1} parent=1 // pred_check_branch
      %530 = sbr.rel (0) target = $region29
    $region28: #{mlp_forward.1} parent=1 // pred_region
      %531 = dma.done [#allocation3], 256
    $region29: #{mlp_forward.1} parent=1 // pred_fallthru
      _
    %532 = vsyncpa [#allocation3], 1

</llo_original>
